<compile_context>
chip_gen: v7x
topology: tpu7x:2x2x1
jax: 0.10.0
libtpu: 0.0.40
codegen_flags: <defaults>
</compile_context>

<pallas_src>
import math

import jax
import jax.numpy as jnp
from jax.experimental import pallas as pl
from jax.experimental.pallas import tpu as pltpu

NEG_SLOPE = 0.01   # torch.nn.LeakyReLU default negative_slope
LANE = 128         # TPU vreg lane width


def _round_up(n, m):
    return ((n + m - 1) // m) * m


# ----------------------------------------------------------------------------
# Kernel
# ----------------------------------------------------------------------------
def _mlp_kernel(x_ref, w1_ref, b1_ref, w2_ref, b2_ref, w3_ref, b3_ref,
                w4_ref, b4_ref, o_ref):
    # x tile arrives as f32; cast to bf16 in-kernel (no wrapper cast pass).
    h = x_ref[...].astype(jnp.bfloat16)

    h = jnp.dot(h, w1_ref[...], preferred_element_type=jnp.float32) + b1_ref[...]
    h = jnp.maximum(h, NEG_SLOPE * h).astype(jnp.bfloat16)      # LeakyReLU

    h = jnp.dot(h, w2_ref[...], preferred_element_type=jnp.float32) + b2_ref[...]
    h = jnp.maximum(h, NEG_SLOPE * h).astype(jnp.bfloat16)

    h = jnp.dot(h, w3_ref[...], preferred_element_type=jnp.float32) + b3_ref[...]
    h = jnp.maximum(h, NEG_SLOPE * h).astype(jnp.bfloat16)

    out = jnp.dot(h, w4_ref[...], preferred_element_type=jnp.float32) + b4_ref[...]
    o_ref[...] = out.astype(o_ref.dtype)     # narrow (tb, out_dim) bf16 writeback


# ----------------------------------------------------------------------------
# Tile selection
# ----------------------------------------------------------------------------
def _choose_tb(batch, block_b):
    """Batch tile: multiple of 16; minimize padding waste; prefer >=2 grid
    steps (v7x megacore) and larger tiles among equal-waste candidates."""
    b16 = _round_up(max(batch, 1), 16)
    small_cap = min(512, block_b)
    if b16 <= small_cap:
        return b16                      # single tile, zero/near-zero padding
    cands = [c for c in (512, 1024, 2048, 4096, 8192) if c <= block_b]
    if not cands:
        cands = [_round_up(block_b, 16)]

    def key(c):
        b_pad = _round_up(b16, c)
        waste = b_pad - batch
        single_step = (b_pad // c) < 2
        return (waste, single_step, -c)

    return min(cands, key=key)


# ----------------------------------------------------------------------------
# Wrapper
# ----------------------------------------------------------------------------
def mlp_forward(x, packed, out_dim, *, block_b=4096):
    """x: (B, in_dim) float. packed: bf16 weights (feature dims lane-padded
    except the final output dim) + f32 biases in (in, out) layout.
    Returns (B, out_dim) float32."""
    B, in_dim = x.shape
    nf_pad = packed["w1"].shape[1]
    assert packed["w4"].shape[1] == out_dim

    tb = _choose_tb(B, block_b)
    b_pad = _round_up(max(B, 1), tb)

    xf = x.astype(jnp.float32)
    if b_pad != B:                      # only copy when padding is needed
        xf = jnp.pad(xf, ((0, b_pad - B), (0, 0)))

    grid = (b_pad // tb,)

    def batch_map(i):                   # x / out tiles march down the batch dim
        return (i, 0)

    def resident_map(i):                # weights & biases: VMEM-resident
        return (0, 0)

    in_specs = [pl.BlockSpec((tb, in_dim), batch_map)] + [
        pl.BlockSpec(packed[k].shape, resident_map)
        for k in ("w1", "b1", "w2", "b2", "w3", "b3", "w4", "b4")
    ]
    out_specs = pl.BlockSpec((tb, out_dim), batch_map)

    flops = 2 * b_pad * (in_dim * nf_pad + 2 * nf_pad * nf_pad
                         + nf_pad * out_dim)
    weight_bytes = sum(int(v.size) * v.dtype.itemsize for v in packed.values())
    bytes_accessed = (b_pad * in_dim * 4       # f32 activations in
                      + b_pad * out_dim * 2    # bf16 narrow output
                      + weight_bytes)

    out_bf16 = pl.pallas_call(
        _mlp_kernel,
        out_shape=jax.ShapeDtypeStruct((b_pad, out_dim), jnp.bfloat16),
        grid=grid,
        in_specs=in_specs,
        out_specs=out_specs,
        compiler_params=pltpu.CompilerParams(
            dimension_semantics=("parallel",),
            vmem_limit_bytes=48 * 1024 * 1024),
        cost_estimate=pl.CostEstimate(flops=flops, transcendentals=0,
                                      bytes_accessed=bytes_accessed),
    )(xf,
      packed["w1"], packed["b1"],
      packed["w2"], packed["b2"],
      packed["w3"], packed["b3"],
      packed["w4"], packed["b4"])

    return out_bf16[:B].astype(jnp.float32)


# ----------------------------------------------------------------------------
# Parameter construction (PyTorch-equivalent init) and packing
# ----------------------------------------------------------------------------
def xavier_uniform(key, fan_in, fan_out):
    """torch.nn.init.xavier_uniform_ equivalent (gain=1), (in, out) layout."""
    limit = math.sqrt(6.0 / (fan_in + fan_out))
    return jax.random.uniform(key, (fan_in, fan_out), jnp.float32,
                              minval=-limit, maxval=limit)


def init_params(key, in_dim, nf, out_dim):
    k1, k2, k3, k4 = jax.random.split(key, 4)
    return {
        "w1": xavier_uniform(k1, in_dim, nf), "b1": jnp.zeros((1, nf), jnp.float32),
        "w2": xavier_uniform(k2, nf, nf),     "b2": jnp.zeros((1, nf), jnp.float32),
        "w3": xavier_uniform(k3, nf, nf),     "b3": jnp.zeros((1, nf), jnp.float32),
        "w4": xavier_uniform(k4, nf, out_dim),"b4": jnp.zeros((1, out_dim), jnp.float32),
    }


def pack_params(params):
    """Cast weights to bf16 and zero-pad hidden feature dims to 128-lane
    multiples (lane-dense matmuls).  The final layer's output dim is NOT
    padded so the kernel writes only the valid columns.  Padded rows/cols are
    zero, so the forward math is unchanged.  Done once, outside the kernel."""
    in_dim = params["w1"].shape[0]
    nf = params["w1"].shape[1]
    out_dim = params["w4"].shape[1]
    nf_p = _round_up(nf, LANE)

    def pad2(a, rows, cols):
        return jnp.pad(a, ((0, rows - a.shape[0]), (0, cols - a.shape[1])))

    return {
        "w1": pad2(params["w1"], in_dim, nf_p).astype(jnp.bfloat16),
        "b1": pad2(params["b1"], 1, nf_p).astype(jnp.float32),
        "w2": pad2(params["w2"], nf_p, nf_p).astype(jnp.bfloat16),
        "b2": pad2(params["b2"], 1, nf_p).astype(jnp.float32),
        "w3": pad2(params["w3"], nf_p, nf_p).astype(jnp.bfloat16),
        "b3": pad2(params["b3"], 1, nf_p).astype(jnp.float32),
        "w4": pad2(params["w4"], nf_p, out_dim).astype(jnp.bfloat16),
        "b4": params["b4"].astype(jnp.float32),
    }


# ----------------------------------------------------------------------------
# References
# ----------------------------------------------------------------------------
def mlp_reference_packed(x, packed):
    """Pure-JAX reference mirroring the kernel numerics exactly
    (bf16 weights/activations, f32 accumulation, bf16 output)."""
    h = x.astype(jnp.float32).astype(jnp.bfloat16)
    for i in (1, 2, 3):
        z = jnp.dot(h, packed[f"w{i}"],
                    preferred_element_type=jnp.float32) + packed[f"b{i}"]
        h = jnp.maximum(z, NEG_SLOPE * z).astype(jnp.bfloat16)
    out = jnp.dot(h, packed["w4"],
                  preferred_element_type=jnp.float32) + packed["b4"]
    return out.astype(jnp.bfloat16).astype(jnp.float32)


def mlp_reference_f32(x, params):
    """Full-precision reference of the original PyTorch Network forward."""
    h = x.astype(jnp.float32)
    for i in (1, 2, 3):
        z = h @ params[f"w{i}"] + params[f"b{i}"]
        h = jnp.where(z >= 0, z, NEG_SLOPE * z)
    return h @ params["w4"] + params["b4"]


if __name__ == "__main__":
    in_dim, nf, out_dim = 32, 64, 16

    key = jax.random.PRNGKey(0)
    kx, kp, kx2 = jax.random.split(key, 3)

    params = init_params(kp, in_dim, nf, out_dim)   # PyTorch-equivalent f32 init
    packed = pack_params(params)                    # bf16 + lane-padded, once

    # --- small batch: single-tile path -------------------------------------
    x = jax.random.normal(kx, (8, in_dim), jnp.float32)
    out = mlp_forward(x, packed, out_dim)
    jax.block_until_ready(out)
    assert out.shape == (8, out_dim) and out.dtype == jnp.float32

    ref_packed = mlp_reference_packed(x, packed)
    assert jnp.allclose(out, ref_packed, atol=1e-3, rtol=1e-3), \
        float(jnp.max(jnp.abs(out - ref_packed)))
    # sanity-check against the true f32 Network (bf16 quantization error bound)
    ref_f32 = mlp_reference_f32(x, params)
    assert jnp.allclose(out, ref_f32, atol=1e-1, rtol=1e-1), \
        float(jnp.max(jnp.abs(out - ref_f32)))

    # --- larger ragged batch: multi-step grid + batch-padding path ----------
    x2 = jax.random.normal(kx2, (1000, in_dim), jnp.float32)
    out2 = mlp_forward(x2, packed, out_dim)
    jax.block_until_ready(out2)
    assert out2.shape == (1000, out_dim)
    ref2 = mlp_reference_packed(x2, packed)
    assert jnp.allclose(out2, ref2, atol=1e-3, rtol=1e-3), \
        float(jnp.max(jnp.abs(out2 - ref2)))

    print("KERNEL_OK")
</pallas_src>

<mosaic_0001>
module attributes {stable_mosaic.version = 11 : i64} {
  func.func @_mlp_kernel(%arg0: i32, %arg1: memref<16x32xf32, #tpu.memory_space<vmem>>, %arg2: memref<32x128xbf16, #tpu.memory_space<vmem>>, %arg3: memref<1x128xf32, #tpu.memory_space<vmem>>, %arg4: memref<128x128xbf16, #tpu.memory_space<vmem>>, %arg5: memref<1x128xf32, #tpu.memory_space<vmem>>, %arg6: memref<128x128xbf16, #tpu.memory_space<vmem>>, %arg7: memref<1x128xf32, #tpu.memory_space<vmem>>, %arg8: memref<128x16xbf16, #tpu.memory_space<vmem>>, %arg9: memref<1x16xf32, #tpu.memory_space<vmem>>, %arg10: memref<16x16xbf16, #tpu.memory_space<vmem>>) attributes {dimension_semantics = [#tpu.dimension_semantics<parallel>], iteration_bounds = array<i64: 1>, scalar_prefetch = 0 : i64, scratch_operands = 0 : i64, tpu.core_type = #tpu.core_type<tc>, window_params = [{transform_indices = @transform_0, window_bounds = array<i64: 16, 32>}, {pipeline_mode = #tpu.pipeline_mode<synchronous>, transform_indices = @transform_1, window_bounds = array<i64: 32, 128>}, {pipeline_mode = #tpu.pipeline_mode<synchronous>, transform_indices = @transform_2, window_bounds = array<i64: 1, 128>}, {pipeline_mode = #tpu.pipeline_mode<synchronous>, transform_indices = @transform_3, window_bounds = array<i64: 128, 128>}, {pipeline_mode = #tpu.pipeline_mode<synchronous>, transform_indices = @transform_4, window_bounds = array<i64: 1, 128>}, {pipeline_mode = #tpu.pipeline_mode<synchronous>, transform_indices = @transform_5, window_bounds = array<i64: 128, 128>}, {pipeline_mode = #tpu.pipeline_mode<synchronous>, transform_indices = @transform_6, window_bounds = array<i64: 1, 128>}, {pipeline_mode = #tpu.pipeline_mode<synchronous>, transform_indices = @transform_7, window_bounds = array<i64: 128, 16>}, {pipeline_mode = #tpu.pipeline_mode<synchronous>, transform_indices = @transform_8, window_bounds = array<i64: 1, 16>}, {transform_indices = @transform_9, window_bounds = array<i64: 16, 16>}]} {
    %c0 = arith.constant 0 : index
    %c0_0 = arith.constant 0 : index
    %0 = vector.load %arg1[%c0, %c0_0] : memref<16x32xf32, #tpu.memory_space<vmem>>, vector<16x32xf32>
    %1 = arith.truncf %0 : vector<16x32xf32> to vector<16x32xbf16>
    %c0_1 = arith.constant 0 : index
    %c0_2 = arith.constant 0 : index
    %2 = vector.load %arg2[%c0_1, %c0_2] : memref<32x128xbf16, #tpu.memory_space<vmem>>, vector<32x128xbf16>
    %cst = arith.constant dense<0.000000e+00> : vector<16x128xf32>
    %3 = tpu.matmul %1, %2, %cst {dimension_numbers = #tpu.dot_dimension_numbers<[1], [0], [0], [1], [0, 0, 1, 1], [], []>} : vector<16x32xbf16>, vector<32x128xbf16>, vector<16x128xf32> -> vector<16x128xf32>
    %c0_3 = arith.constant 0 : index
    %c0_4 = arith.constant 0 : index
    %4 = vector.load %arg3[%c0_3, %c0_4] : memref<1x128xf32, #tpu.memory_space<vmem>>, vector<1x128xf32>
    %5 = vector.broadcast %4 : vector<1x128xf32> to vector<16x128xf32>
    %6 = arith.addf %3, %5 : vector<16x128xf32>
    %cst_5 = arith.constant 0.00999999977 : f32
    %7 = vector.broadcast %cst_5 : f32 to vector<16x128xf32>
    %8 = arith.mulf %7, %6 : vector<16x128xf32>
    %9 = arith.maximumf %6, %8 : vector<16x128xf32>
    %10 = arith.truncf %9 : vector<16x128xf32> to vector<16x128xbf16>
    %c0_6 = arith.constant 0 : index
    %c0_7 = arith.constant 0 : index
    %11 = vector.load %arg4[%c0_6, %c0_7] : memref<128x128xbf16, #tpu.memory_space<vmem>>, vector<128x128xbf16>
    %cst_8 = arith.constant dense<0.000000e+00> : vector<16x128xf32>
    %12 = tpu.matmul %10, %11, %cst_8 {dimension_numbers = #tpu.dot_dimension_numbers<[1], [0], [0], [1], [0, 0, 1, 1], [], []>} : vector<16x128xbf16>, vector<128x128xbf16>, vector<16x128xf32> -> vector<16x128xf32>
    %c0_9 = arith.constant 0 : index
    %c0_10 = arith.constant 0 : index
    %13 = vector.load %arg5[%c0_9, %c0_10] : memref<1x128xf32, #tpu.memory_space<vmem>>, vector<1x128xf32>
    %14 = vector.broadcast %13 : vector<1x128xf32> to vector<16x128xf32>
    %15 = arith.addf %12, %14 : vector<16x128xf32>
    %cst_11 = arith.constant 0.00999999977 : f32
    %16 = vector.broadcast %cst_11 : f32 to vector<16x128xf32>
    %17 = arith.mulf %16, %15 : vector<16x128xf32>
    %18 = arith.maximumf %15, %17 : vector<16x128xf32>
    %19 = arith.truncf %18 : vector<16x128xf32> to vector<16x128xbf16>
    %c0_12 = arith.constant 0 : index
    %c0_13 = arith.constant 0 : index
    %20 = vector.load %arg6[%c0_12, %c0_13] : memref<128x128xbf16, #tpu.memory_space<vmem>>, vector<128x128xbf16>
    %cst_14 = arith.constant dense<0.000000e+00> : vector<16x128xf32>
    %21 = tpu.matmul %19, %20, %cst_14 {dimension_numbers = #tpu.dot_dimension_numbers<[1], [0], [0], [1], [0, 0, 1, 1], [], []>} : vector<16x128xbf16>, vector<128x128xbf16>, vector<16x128xf32> -> vector<16x128xf32>
    %c0_15 = arith.constant 0 : index
    %c0_16 = arith.constant 0 : index
    %22 = vector.load %arg7[%c0_15, %c0_16] : memref<1x128xf32, #tpu.memory_space<vmem>>, vector<1x128xf32>
    %23 = vector.broadcast %22 : vector<1x128xf32> to vector<16x128xf32>
    %24 = arith.addf %21, %23 : vector<16x128xf32>
    %cst_17 = arith.constant 0.00999999977 : f32
    %25 = vector.broadcast %cst_17 : f32 to vector<16x128xf32>
    %26 = arith.mulf %25, %24 : vector<16x128xf32>
    %27 = arith.maximumf %24, %26 : vector<16x128xf32>
    %28 = arith.truncf %27 : vector<16x128xf32> to vector<16x128xbf16>
    %c0_18 = arith.constant 0 : index
    %c0_19 = arith.constant 0 : index
    %29 = vector.load %arg8[%c0_18, %c0_19] : memref<128x16xbf16, #tpu.memory_space<vmem>>, vector<128x16xbf16>
    %cst_20 = arith.constant dense<0.000000e+00> : vector<16x16xf32>
    %30 = tpu.matmul %28, %29, %cst_20 {dimension_numbers = #tpu.dot_dimension_numbers<[1], [0], [0], [1], [0, 0, 1, 1], [], []>} : vector<16x128xbf16>, vector<128x16xbf16>, vector<16x16xf32> -> vector<16x16xf32>
    %c0_21 = arith.constant 0 : index
    %c0_22 = arith.constant 0 : index
    %31 = vector.load %arg9[%c0_21, %c0_22] : memref<1x16xf32, #tpu.memory_space<vmem>>, vector<1x16xf32>
    %32 = vector.broadcast %31 : vector<1x16xf32> to vector<16x16xf32>
    %33 = arith.addf %30, %32 : vector<16x16xf32>
    %34 = arith.truncf %33 : vector<16x16xf32> to vector<16x16xbf16>
    %c0_23 = arith.constant 0 : index
    %c0_24 = arith.constant 0 : index
    %35 = vector.load %arg10[%c0_23, %c0_24] : memref<16x16xbf16, #tpu.memory_space<vmem>>, vector<16x16xbf16>
    tpu.vector_store %arg10[%c0_23, %c0_24], %34 {strides = array<i32>} : memref<16x16xbf16, #tpu.memory_space<vmem>>, vector<16x16xbf16>,
    return
  }
  func.func @transform_0(%arg0: i32) -> (i32, i32) {
    %c0_i32 = arith.constant 0 : i32
    %c0_i32_0 = arith.constant 0 : i32
    return %arg0, %c0_i32 : i32, i32
  }
  func.func @transform_1(%arg0: i32) -> (i32, i32) {
    %c0_i32 = arith.constant 0 : i32
    %c0_i32_0 = arith.constant 0 : i32
    %c0_i32_1 = arith.constant 0 : i32
    return %c0_i32, %c0_i32_0 : i32, i32
  }
  func.func @transform_2(%arg0: i32) -> (i32, i32) {
    %c0_i32 = arith.constant 0 : i32
    %c0_i32_0 = arith.constant 0 : i32
    %c0_i32_1 = arith.constant 0 : i32
    return %c0_i32, %c0_i32_0 : i32, i32
  }
  func.func @transform_3(%arg0: i32) -> (i32, i32) {
    %c0_i32 = arith.constant 0 : i32
    %c0_i32_0 = arith.constant 0 : i32
    %c0_i32_1 = arith.constant 0 : i32
    return %c0_i32, %c0_i32_0 : i32, i32
  }
  func.func @transform_4(%arg0: i32) -> (i32, i32) {
    %c0_i32 = arith.constant 0 : i32
    %c0_i32_0 = arith.constant 0 : i32
    %c0_i32_1 = arith.constant 0 : i32
    return %c0_i32, %c0_i32_0 : i32, i32
  }
  func.func @transform_5(%arg0: i32) -> (i32, i32) {
    %c0_i32 = arith.constant 0 : i32
    %c0_i32_0 = arith.constant 0 : i32
    %c0_i32_1 = arith.constant 0 : i32
    return %c0_i32, %c0_i32_0 : i32, i32
  }
  func.func @transform_6(%arg0: i32) -> (i32, i32) {
    %c0_i32 = arith.constant 0 : i32
    %c0_i32_0 = arith.constant 0 : i32
    %c0_i32_1 = arith.constant 0 : i32
    return %c0_i32, %c0_i32_0 : i32, i32
  }
  func.func @transform_7(%arg0: i32) -> (i32, i32) {
    %c0_i32 = arith.constant 0 : i32
    %c0_i32_0 = arith.constant 0 : i32
    %c0_i32_1 = arith.constant 0 : i32
    return %c0_i32, %c0_i32_0 : i32, i32
  }
  func.func @transform_8(%arg0: i32) -> (i32, i32) {
    %c0_i32 = arith.constant 0 : i32
    %c0_i32_0 = arith.constant 0 : i32
    %c0_i32_1 = arith.constant 0 : i32
    return %c0_i32, %c0_i32_0 : i32, i32
  }
  func.func @transform_9(%arg0: i32) -> (i32, i32) {
    %c0_i32 = arith.constant 0 : i32
    %c0_i32_0 = arith.constant 0 : i32
    return %arg0, %c0_i32 : i32, i32
  }
}

</mosaic_0001>

<llo_original>
// kernel: tpu_custom_call.1
$region0: #{tpu_custom_call.1}
  #allocation0 [shape = 'u32[]', space=smem, size = 0x4, offset = 0x4, fixed_abs, tag = 'smem constant byte address 0x4 - core index']
  #allocation1 [shape = 'u32[144,128]{1,0:T(1,128)}', space=vmem, size = 0x12000, scoped, tag = 'internal scratch']
  %s0 = inlined_call_operand.vmem [shape: f32[16,32], index: 0, kind: input, shape index: {}]
  %s1 = inlined_call_operand.hbm [shape: bf16[32,128], index: 1, kind: input, shape index: {}]
  %s2 = inlined_call_operand.vmem [shape: f32[1,128], index: 2, kind: input, shape index: {}]
  %s3 = inlined_call_operand.vmem [shape: bf16[128,128], index: 3, kind: input, shape index: {}]
  %s4 = inlined_call_operand.vmem [shape: f32[1,128], index: 4, kind: input, shape index: {}]
  %s5 = inlined_call_operand.hbm [shape: bf16[128,128], index: 5, kind: input, shape index: {}]
  %s6 = inlined_call_operand.vmem [shape: f32[1,128], index: 6, kind: input, shape index: {}]
  %s7 = inlined_call_operand.vmem [shape: bf16[128,16], index: 7, kind: input, shape index: {}]
  %s8 = inlined_call_operand.vmem [shape: f32[1,16], index: 8, kind: input, shape index: {}]
  %s9 = inlined_call_operand.hbm [shape: bf16[16,16], index: 9, kind: output, shape index: {}]
  %s10 = sld [smem:[#allocation0]]
  $region54: #{tpu_custom_call.1} parent=0
    _
  %s12 = ssub.s32 1, %s10
  %s13 = scalar_select 0, %s12, %s10
  $region1: #{tpu_custom_call.1} parent=0
    #allocation2 [shape = 'u8[8192]{0}', space=vmem, size = 0x2000, scoped, tag = 'input window, operand 1, single buffered']
    #allocation3 [shape = 's32[1]{0}', space=sflag, size = 0x4, scoped, tag = 'scoped memory for tpu_custom_call.1']
    #allocation4 [shape = 's32[1]{0}', space=sflag, size = 0x4, scoped, tag = 'scoped memory for tpu_custom_call.1']
    #allocation5 [shape = 'u8[32768]{0}', space=vmem, size = 0x8000, scoped, tag = 'input window, operand 5, single buffered']
    #allocation6 [shape = 's32[1]{0}', space=sflag, size = 0x4, scoped, tag = 'scoped memory for tpu_custom_call.1']
    #allocation7 [shape = 'u8[4096]{0}', space=vmem, size = 0x1000, scoped, tag = 'output window, operand 0, single buffered']
    %14 = vsyncpa [#allocation3], 0
    %15 = vsyncpa [#allocation6], 0
    %16 = vsyncpa [#allocation4], 0
    // Predicated region
    $region2: #{tpu_custom_call.1} parent=1 // pred_check
      _
    $region3: #{tpu_custom_call.1} parent=1 // pred_check_branch
      %18 = sbr.rel (0) target = $region5
    $region4: #{tpu_custom_call.1} parent=1 // pred_region
      _
    $region5: #{tpu_custom_call.1} parent=1 // pred_fallthru
      _
    // Predicated region
    $region6: #{tpu_custom_call.1} parent=1 // pred_check
      _
    $region7: #{tpu_custom_call.1} parent=1 // pred_check_branch
      %20 = sbr.rel (0) target = $region9
    $region8: #{tpu_custom_call.1} parent=1 // pred_region
      %s22 = ssub.s32 256, 256
      %23 = vsyncadd [#allocation3], %s22
      %s24 = sshll.u32 [#allocation2], 4
      %s25 = int_to_ptr.vmem [resolvable:$true] %s24
      %30 = dma.hbm_to_vmem [thread:$0]  %s1, 256, %s25, [#allocation3], 64, 64, 4
    $region9: #{tpu_custom_call.1} parent=1 // pred_fallthru
      _
    // Predicated region
    $region10: #{tpu_custom_call.1} parent=1 // pred_check
      _
    $region11: #{tpu_custom_call.1} parent=1 // pred_check_branch
      %32 = sbr.rel (0) target = $region13
    $region12: #{tpu_custom_call.1} parent=1 // pred_region
      _
    $region13: #{tpu_custom_call.1} parent=1 // pred_fallthru
      _
    // Predicated region
    $region14: #{tpu_custom_call.1} parent=1 // pred_check
      _
    $region15: #{tpu_custom_call.1} parent=1 // pred_check_branch
      %34 = sbr.rel (0) target = $region17
    $region16: #{tpu_custom_call.1} parent=1 // pred_region
      _
    $region17: #{tpu_custom_call.1} parent=1 // pred_fallthru
      _
    // Predicated region
    $region18: #{tpu_custom_call.1} parent=1 // pred_check
      _
    $region19: #{tpu_custom_call.1} parent=1 // pred_check_branch
      %36 = sbr.rel (0) target = $region21
    $region20: #{tpu_custom_call.1} parent=1 // pred_region
      _
    $region21: #{tpu_custom_call.1} parent=1 // pred_fallthru
      _
    // Predicated region
    $region22: #{tpu_custom_call.1} parent=1 // pred_check
      _
    $region23: #{tpu_custom_call.1} parent=1 // pred_check_branch
      %38 = sbr.rel (0) target = $region25
    $region24: #{tpu_custom_call.1} parent=1 // pred_region
      %s40 = ssub.s32 1024, 1024
      %41 = vsyncadd [#allocation6], %s40
      %s42 = sshll.u32 [#allocation5], 4
      %s43 = int_to_ptr.vmem [resolvable:$true] %s42
      %48 = dma.hbm_to_vmem [thread:$0]  %s5, 1024, %s43, [#allocation6], 64, 64, 4
    $region25: #{tpu_custom_call.1} parent=1 // pred_fallthru
      _
    // Predicated region
    $region26: #{tpu_custom_call.1} parent=1 // pred_check
      _
    $region27: #{tpu_custom_call.1} parent=1 // pred_check_branch
      %50 = sbr.rel (0) target = $region29
    $region28: #{tpu_custom_call.1} parent=1 // pred_region
      _
    $region29: #{tpu_custom_call.1} parent=1 // pred_fallthru
      _
    // Predicated region
    $region30: #{tpu_custom_call.1} parent=1 // pred_check
      _
    $region31: #{tpu_custom_call.1} parent=1 // pred_check_branch
      %52 = sbr.rel (0) target = $region33
    $region32: #{tpu_custom_call.1} parent=1 // pred_region
      _
    $region33: #{tpu_custom_call.1} parent=1 // pred_fallthru
      _
    // Predicated region
    $region34: #{tpu_custom_call.1} parent=1 // pred_check
      _
    $region35: #{tpu_custom_call.1} parent=1 // pred_check_branch
      %54 = sbr.rel (0) target = $region37
    $region36: #{tpu_custom_call.1} parent=1 // pred_region
      _
    $region37: #{tpu_custom_call.1} parent=1 // pred_fallthru
      _
    // Predicated region
    $region38: #{tpu_custom_call.1} parent=1 // pred_check
      _
    $region39: #{tpu_custom_call.1} parent=1 // pred_check_branch
      %56 = sbr.rel (0) target = $region41
    $region40: #{tpu_custom_call.1} parent=1 // pred_region
      %57 = dma.done [#allocation3], 256
    $region41: #{tpu_custom_call.1} parent=1 // pred_fallthru
      _
    // Predicated region
    $region42: #{tpu_custom_call.1} parent=1 // pred_check
      _
    $region43: #{tpu_custom_call.1} parent=1 // pred_check_branch
      %59 = sbr.rel (0) target = $region45
    $region44: #{tpu_custom_call.1} parent=1 // pred_region
      %60 = dma.done [#allocation6], 1024
    $region45: #{tpu_custom_call.1} parent=1 // pred_fallthru
      _
    %v62 = vld [vmem:[%s0] sm:$0xff]
    %v63 = vld [vmem:[%s0 + $0x8] sm:$0xff]
    %v64 = vpack.c.bf16 %v63, %v62
    %v65 = vld [vmem:[#allocation2] sm:$0xf]
    %v66 = vld [vmem:[#allocation2 + $0x4] sm:$0xf]
    %v67 = vld [vmem:[#allocation2 + $0x8] sm:$0xf]
    %v68 = vld [vmem:[#allocation2 + $0xc] sm:$0xf]
    %v69 = vld [vmem:[%s2] sm:$0x1]
    %v71 = vlaneseq
    %v72 = vshrl.u32 %v71, 7
    %v73 = vsub.s32 0, %v72
    %v74 = vrot.slane %v69, %v73
    %v80 = vunpack.c.l.b16 %v65
    %v81 = vunpack.c.l.b16 %v66
    %v82 = vunpack.c.l.b16 %v67
    %v83 = vunpack.c.l.b16 %v68
    %v84 = vpack.c.b16 %v81, %v80
    %v85 = vpack.c.b16 %v83, %v82
    %vm88 = vcmask 261120
    %v90 = vsel %vm88, %v64, 0
    %92 = vmatprep.subr.bf16.mxu0 0
    %93 = vmatpush1.bf16.msra.mxu0 %v84
    %94 = vmatprep.subr.bf16.mxu0 0
    %95 = vmatpush1.bf16.msra.mxu0 %v85
    %96 = vmatprep.subr.bf16.mxu0 0
    %97 = vmatpush1.bf16.msra.mxu0 0
    %98 = vmatprep.subr.bf16.mxu0 0
    %99 = vmatpush1.bf16.msra.mxu0 0
    %100 = vmatprep.subr.bf16.mxu0 0
    %101 = vmatpush1.bf16.msra.mxu0 0
    %102 = vmatprep.subr.bf16.mxu0 0
    %103 = vmatpush1.bf16.msra.mxu0 0
    %104 = vmatprep.subr.bf16.mxu0 0
    %105 = vmatpush1.bf16.msra.mxu0 0
    %106 = vmatprep.subr.bf16.mxu0 0
    %107 = vmatpush1.bf16.msra.mxu0 0
    %108 = vmatprep.subr.bf16.mxu0 0
    %109 = vmatpush1.bf16.msra.mxu0 0
    %110 = vmatprep.subr.bf16.mxu0 0
    %111 = vmatpush1.bf16.msra.mxu0 0
    %112 = vmatprep.subr.bf16.mxu0 0
    %113 = vmatpush1.bf16.msra.mxu0 0
    %114 = vmatprep.subr.bf16.mxu0 0
    %115 = vmatpush1.bf16.msra.mxu0 0
    %116 = vmatprep.subr.bf16.mxu0 0
    %117 = vmatpush1.bf16.msra.mxu0 0
    %118 = vmatprep.subr.bf16.mxu0 0
    %119 = vmatpush1.bf16.msra.mxu0 0
    %120 = vmatprep.subr.bf16.mxu0 0
    %121 = vmatpush1.bf16.msra.mxu0 0
    %122 = vmatprep.subr.bf16.mxu0 0
    %123 = vmatpush1.bf16.msra.mxu0 0
    %124 = vmatprep.mubr.bf16.mxu0 0
    %125 = vmatmul.mubr.bf16.gmra.mrb[0].mxu0 %v90
    %v126 = vpop.f32.mrb[0].mxu0
    %v127 = vadd.f32 %v74, %v126
    %v128 = vpop.f32.mrb[0].mxu0
    %v129 = vpop.f32.mrb[0].mxu0
    %v130 = vadd.f32 %v74, %v129
    %v131 = vpop.f32.mrb[0].mxu0
    %132 = vdwg.mxu0
    %v133 = vmul.f32 %v127, 0.01
    %v134 = vmul.f32 %v130, 0.01
    %v135 = vmax.f32 %v127, %v133
    %v136 = vmax.f32 %v130, %v134
    %v137 = vpack.c.bf16 %v136, %v135
    %v138 = vld [vmem:[%s3] sm:$0xf]
    %v139 = vld [vmem:[%s3 + $0x4] sm:$0xf]
    %v140 = vld [vmem:[%s3 + $0x8] sm:$0xf]
    %v141 = vld [vmem:[%s3 + $0xc] sm:$0xf]
    %v142 = vld [vmem:[%s3 + $0x10] sm:$0xf]
    %v143 = vld [vmem:[%s3 + $0x14] sm:$0xf]
    %v144 = vld [vmem:[%s3 + $0x18] sm:$0xf]
    %v145 = vld [vmem:[%s3 + $0x1c] sm:$0xf]
    %v146 = vld [vmem:[%s3 + $0x20] sm:$0xf]
    %v147 = vld [vmem:[%s3 + $0x24] sm:$0xf]
    %v148 = vld [vmem:[%s3 + $0x28] sm:$0xf]
    %v149 = vld [vmem:[%s3 + $0x2c] sm:$0xf]
    %v150 = vld [vmem:[%s3 + $0x30] sm:$0xf]
    %v151 = vld [vmem:[%s3 + $0x34] sm:$0xf]
    %v152 = vld [vmem:[%s3 + $0x38] sm:$0xf]
    %v153 = vld [vmem:[%s3 + $0x3c] sm:$0xf]
    %v154 = vld [vmem:[%s4] sm:$0x1]
    %v156 = vlaneseq
    %v157 = vshrl.u32 %v156, 7
    %v158 = vsub.s32 0, %v157
    %v159 = vrot.slane %v154, %v158
    %v177 = vunpack.c.l.b16 %v138
    %v178 = vunpack.c.l.b16 %v139
    %v179 = vunpack.c.l.b16 %v140
    %v180 = vunpack.c.l.b16 %v141
    %v181 = vunpack.c.l.b16 %v142
    %v182 = vunpack.c.l.b16 %v143
    %v183 = vunpack.c.l.b16 %v144
    %v184 = vunpack.c.l.b16 %v145
    %v185 = vunpack.c.l.b16 %v146
    %v186 = vunpack.c.l.b16 %v147
    %v187 = vunpack.c.l.b16 %v148
    %v188 = vunpack.c.l.b16 %v149
    %v189 = vunpack.c.l.b16 %v150
    %v190 = vunpack.c.l.b16 %v151
    %v191 = vunpack.c.l.b16 %v152
    %v192 = vunpack.c.l.b16 %v153
    %v193 = vpack.c.b16 %v178, %v177
    %v194 = vpack.c.b16 %v180, %v179
    %v195 = vpack.c.b16 %v182, %v181
    %v196 = vpack.c.b16 %v184, %v183
    %v197 = vpack.c.b16 %v186, %v185
    %v198 = vpack.c.b16 %v188, %v187
    %v199 = vpack.c.b16 %v190, %v189
    %v200 = vpack.c.b16 %v192, %v191
    %209 = vmatprep.subr.bf16.mxu0 0
    %210 = vmatpush1.bf16.msra.mxu0 %v193
    %211 = vmatprep.subr.bf16.mxu0 0
    %212 = vmatpush1.bf16.msra.mxu0 %v194
    %213 = vmatprep.subr.bf16.mxu0 0
    %214 = vmatpush1.bf16.msra.mxu0 %v195
    %215 = vmatprep.subr.bf16.mxu0 0
    %216 = vmatpush1.bf16.msra.mxu0 %v196
    %217 = vmatprep.subr.bf16.mxu0 0
    %218 = vmatpush1.bf16.msra.mxu0 %v197
    %219 = vmatprep.subr.bf16.mxu0 0
    %220 = vmatpush1.bf16.msra.mxu0 %v198
    %221 = vmatprep.subr.bf16.mxu0 0
    %222 = vmatpush1.bf16.msra.mxu0 %v199
    %223 = vmatprep.subr.bf16.mxu0 0
    %224 = vmatpush1.bf16.msra.mxu0 %v200
    %225 = vmatprep.subr.bf16.mxu0 0
    %226 = vmatpush1.bf16.msra.mxu0 0
    %227 = vmatprep.subr.bf16.mxu0 0
    %228 = vmatpush1.bf16.msra.mxu0 0
    %229 = vmatprep.subr.bf16.mxu0 0
    %230 = vmatpush1.bf16.msra.mxu0 0
    %231 = vmatprep.subr.bf16.mxu0 0
    %232 = vmatpush1.bf16.msra.mxu0 0
    %233 = vmatprep.subr.bf16.mxu0 0
    %234 = vmatpush1.bf16.msra.mxu0 0
    %235 = vmatprep.subr.bf16.mxu0 0
    %236 = vmatpush1.bf16.msra.mxu0 0
    %237 = vmatprep.subr.bf16.mxu0 0
    %238 = vmatpush1.bf16.msra.mxu0 0
    %239 = vmatprep.subr.bf16.mxu0 0
    %240 = vmatpush1.bf16.msra.mxu0 0
    %241 = vmatprep.mubr.bf16.mxu0 0
    %242 = vmatmul.mubr.bf16.gmra.mrb[0].mxu0 %v137
    %v243 = vpop.f32.mrb[0].mxu0
    %v244 = vadd.f32 %v159, %v243
    %v245 = vpop.f32.mrb[0].mxu0
    %v246 = vpop.f32.mrb[0].mxu0
    %v247 = vadd.f32 %v159, %v246
    %v248 = vpop.f32.mrb[0].mxu0
    %249 = vdwg.mxu0
    %v250 = vmul.f32 %v244, 0.01
    %v251 = vmul.f32 %v247, 0.01
    %v252 = vmax.f32 %v244, %v250
    %v253 = vmax.f32 %v247, %v251
    %v254 = vpack.c.bf16 %v253, %v252
    %v255 = vld [vmem:[#allocation5] sm:$0xf]
    %v256 = vld [vmem:[#allocation5 + $0x4] sm:$0xf]
    %v257 = vld [vmem:[#allocation5 + $0x8] sm:$0xf]
    %v258 = vld [vmem:[#allocation5 + $0xc] sm:$0xf]
    %v259 = vld [vmem:[#allocation5 + $0x10] sm:$0xf]
    %v260 = vld [vmem:[#allocation5 + $0x14] sm:$0xf]
    %v261 = vld [vmem:[#allocation5 + $0x18] sm:$0xf]
    %v262 = vld [vmem:[#allocation5 + $0x1c] sm:$0xf]
    %v263 = vld [vmem:[#allocation5 + $0x20] sm:$0xf]
    %v264 = vld [vmem:[#allocation5 + $0x24] sm:$0xf]
    %v265 = vld [vmem:[#allocation5 + $0x28] sm:$0xf]
    %v266 = vld [vmem:[#allocation5 + $0x2c] sm:$0xf]
    %v267 = vld [vmem:[#allocation5 + $0x30] sm:$0xf]
    %v268 = vld [vmem:[#allocation5 + $0x34] sm:$0xf]
    %v269 = vld [vmem:[#allocation5 + $0x38] sm:$0xf]
    %v270 = vld [vmem:[#allocation5 + $0x3c] sm:$0xf]
    %v271 = vld [vmem:[%s6] sm:$0x1]
    %v273 = vlaneseq
    %v274 = vshrl.u32 %v273, 7
    %v275 = vsub.s32 0, %v274
    %v276 = vrot.slane %v271, %v275
    %v294 = vunpack.c.l.b16 %v255
    %v295 = vunpack.c.l.b16 %v256
    %v296 = vunpack.c.l.b16 %v257
    %v297 = vunpack.c.l.b16 %v258
    %v298 = vunpack.c.l.b16 %v259
    %v299 = vunpack.c.l.b16 %v260
    %v300 = vunpack.c.l.b16 %v261
    %v301 = vunpack.c.l.b16 %v262
    %v302 = vunpack.c.l.b16 %v263
    %v303 = vunpack.c.l.b16 %v264
    %v304 = vunpack.c.l.b16 %v265
    %v305 = vunpack.c.l.b16 %v266
    %v306 = vunpack.c.l.b16 %v267
    %v307 = vunpack.c.l.b16 %v268
    %v308 = vunpack.c.l.b16 %v269
    %v309 = vunpack.c.l.b16 %v270
    %v310 = vpack.c.b16 %v295, %v294
    %v311 = vpack.c.b16 %v297, %v296
    %v312 = vpack.c.b16 %v299, %v298
    %v313 = vpack.c.b16 %v301, %v300
    %v314 = vpack.c.b16 %v303, %v302
    %v315 = vpack.c.b16 %v305, %v304
    %v316 = vpack.c.b16 %v307, %v306
    %v317 = vpack.c.b16 %v309, %v308
    %326 = vmatprep.subr.bf16.mxu0 0
    %327 = vmatpush1.bf16.msra.mxu0 %v310
    %328 = vmatprep.subr.bf16.mxu0 0
    %329 = vmatpush1.bf16.msra.mxu0 %v311
    %330 = vmatprep.subr.bf16.mxu0 0
    %331 = vmatpush1.bf16.msra.mxu0 %v312
    %332 = vmatprep.subr.bf16.mxu0 0
    %333 = vmatpush1.bf16.msra.mxu0 %v313
    %334 = vmatprep.subr.bf16.mxu0 0
    %335 = vmatpush1.bf16.msra.mxu0 %v314
    %336 = vmatprep.subr.bf16.mxu0 0
    %337 = vmatpush1.bf16.msra.mxu0 %v315
    %338 = vmatprep.subr.bf16.mxu0 0
    %339 = vmatpush1.bf16.msra.mxu0 %v316
    %340 = vmatprep.subr.bf16.mxu0 0
    %341 = vmatpush1.bf16.msra.mxu0 %v317
    %342 = vmatprep.subr.bf16.mxu0 0
    %343 = vmatpush1.bf16.msra.mxu0 0
    %344 = vmatprep.subr.bf16.mxu0 0
    %345 = vmatpush1.bf16.msra.mxu0 0
    %346 = vmatprep.subr.bf16.mxu0 0
    %347 = vmatpush1.bf16.msra.mxu0 0
    %348 = vmatprep.subr.bf16.mxu0 0
    %349 = vmatpush1.bf16.msra.mxu0 0
    %350 = vmatprep.subr.bf16.mxu0 0
    %351 = vmatpush1.bf16.msra.mxu0 0
    %352 = vmatprep.subr.bf16.mxu0 0
    %353 = vmatpush1.bf16.msra.mxu0 0
    %354 = vmatprep.subr.bf16.mxu0 0
    %355 = vmatpush1.bf16.msra.mxu0 0
    %356 = vmatprep.subr.bf16.mxu0 0
    %357 = vmatpush1.bf16.msra.mxu0 0
    %358 = vmatprep.mubr.bf16.mxu0 0
    %359 = vmatmul.mubr.bf16.gmra.mrb[0].mxu0 %v254
    %v360 = vpop.f32.mrb[0].mxu0
    %v361 = vadd.f32 %v276, %v360
    %v362 = vpop.f32.mrb[0].mxu0
    %v363 = vpop.f32.mrb[0].mxu0
    %v364 = vadd.f32 %v276, %v363
    %v365 = vpop.f32.mrb[0].mxu0
    %366 = vdwg.mxu0
    %v367 = vmul.f32 %v361, 0.01
    %v368 = vmul.f32 %v364, 0.01
    %v369 = vmax.f32 %v361, %v367
    %v370 = vmax.f32 %v364, %v368
    %v371 = vpack.c.bf16 %v370, %v369
    %v372 = vld [vmem:[%s7] sm:$0xf]
    %v373 = vld [vmem:[%s7 + $0x4] sm:$0xf]
    %v374 = vld [vmem:[%s7 + $0x8] sm:$0xf]
    %v375 = vld [vmem:[%s7 + $0xc] sm:$0xf]
    %v376 = vld [vmem:[%s7 + $0x10] sm:$0xf]
    %v377 = vld [vmem:[%s7 + $0x14] sm:$0xf]
    %v378 = vld [vmem:[%s7 + $0x18] sm:$0xf]
    %v379 = vld [vmem:[%s7 + $0x1c] sm:$0xf]
    %v380 = vld [vmem:[%s7 + $0x20] sm:$0xf]
    %v381 = vld [vmem:[%s7 + $0x24] sm:$0xf]
    %v382 = vld [vmem:[%s7 + $0x28] sm:$0xf]
    %v383 = vld [vmem:[%s7 + $0x2c] sm:$0xf]
    %v384 = vld [vmem:[%s7 + $0x30] sm:$0xf]
    %v385 = vld [vmem:[%s7 + $0x34] sm:$0xf]
    %v386 = vld [vmem:[%s7 + $0x38] sm:$0xf]
    %v387 = vld [vmem:[%s7 + $0x3c] sm:$0xf]
    %v388 = vld [vmem:[%s8] sm:$0x1]
    %v390 = vlaneseq
    %v391 = vshrl.u32 %v390, 7
    %v392 = vsub.s32 0, %v391
    %v393 = vrot.slane %v388, %v392
    %v411 = vunpack.c.l.b16 %v372
    %v412 = vunpack.c.l.b16 %v373
    %v413 = vunpack.c.l.b16 %v374
    %v414 = vunpack.c.l.b16 %v375
    %v415 = vunpack.c.l.b16 %v376
    %v416 = vunpack.c.l.b16 %v377
    %v417 = vunpack.c.l.b16 %v378
    %v418 = vunpack.c.l.b16 %v379
    %v419 = vunpack.c.l.b16 %v380
    %v420 = vunpack.c.l.b16 %v381
    %v421 = vunpack.c.l.b16 %v382
    %v422 = vunpack.c.l.b16 %v383
    %v423 = vunpack.c.l.b16 %v384
    %v424 = vunpack.c.l.b16 %v385
    %v425 = vunpack.c.l.b16 %v386
    %v426 = vunpack.c.l.b16 %v387
    %v427 = vpack.c.b16 %v412, %v411
    %v428 = vpack.c.b16 %v414, %v413
    %v429 = vpack.c.b16 %v416, %v415
    %v430 = vpack.c.b16 %v418, %v417
    %v431 = vpack.c.b16 %v420, %v419
    %v432 = vpack.c.b16 %v422, %v421
    %v433 = vpack.c.b16 %v424, %v423
    %v434 = vpack.c.b16 %v426, %v425
    %443 = vmatprep.subr.bf16.mxu0 0
    %444 = vmatpush1.bf16.msra.mxu0 %v427
    %445 = vmatprep.subr.bf16.mxu0 0
    %446 = vmatpush1.bf16.msra.mxu0 %v428
    %447 = vmatprep.subr.bf16.mxu0 0
    %448 = vmatpush1.bf16.msra.mxu0 %v429
    %449 = vmatprep.subr.bf16.mxu0 0
    %450 = vmatpush1.bf16.msra.mxu0 %v430
    %451 = vmatprep.subr.bf16.mxu0 0
    %452 = vmatpush1.bf16.msra.mxu0 %v431
    %453 = vmatprep.subr.bf16.mxu0 0
    %454 = vmatpush1.bf16.msra.mxu0 %v432
    %455 = vmatprep.subr.bf16.mxu0 0
    %456 = vmatpush1.bf16.msra.mxu0 %v433
    %457 = vmatprep.subr.bf16.mxu0 0
    %458 = vmatpush1.bf16.msra.mxu0 %v434
    %459 = vmatprep.subr.bf16.mxu0 0
    %460 = vmatpush1.bf16.msra.mxu0 0
    %461 = vmatprep.subr.bf16.mxu0 0
    %462 = vmatpush1.bf16.msra.mxu0 0
    %463 = vmatprep.subr.bf16.mxu0 0
    %464 = vmatpush1.bf16.msra.mxu0 0
    %465 = vmatprep.subr.bf16.mxu0 0
    %466 = vmatpush1.bf16.msra.mxu0 0
    %467 = vmatprep.subr.bf16.mxu0 0
    %468 = vmatpush1.bf16.msra.mxu0 0
    %469 = vmatprep.subr.bf16.mxu0 0
    %470 = vmatpush1.bf16.msra.mxu0 0
    %471 = vmatprep.subr.bf16.mxu0 0
    %472 = vmatpush1.bf16.msra.mxu0 0
    %473 = vmatprep.subr.bf16.mxu0 0
    %474 = vmatpush1.bf16.msra.mxu0 0
    %475 = vmatprep.mubr.bf16.mxu0 0
    %476 = vmatmul.mubr.bf16.gmra.mrb[0].mxu0 %v371
    %v477 = vpop.f32.mrb[0].mxu0
    %v478 = vadd.f32 %v393, %v477
    %v479 = vpop.f32.mrb[0].mxu0
    %v480 = vpop.f32.mrb[0].mxu0
    %v481 = vadd.f32 %v393, %v480
    %v482 = vpop.f32.mrb[0].mxu0
    %483 = vdwg.mxu0
    %v484 = vpack.c.bf16 %v481, %v478
    %v486 = vunpack.c.l.b16 %v484
    %v487 = vunpack.c.h.b16 %v484
    %v488 = vpack.c.b16 %v486, %v486
    %v489 = vpack.c.b16 %v487, %v487
    %vm492 = vcmask 125952
    %493 = vst.msk [vmem:[#allocation7] sm:$0xf] %vm492, %v488
    %494 = vst.msk [vmem:[#allocation7 + $0x4] sm:$0xf] %vm492, %v489
    // Predicated region
    $region46: #{tpu_custom_call.1} parent=1 // pred_check
      _
    $region47: #{tpu_custom_call.1} parent=1 // pred_check_branch
      %496 = sbr.rel (0) target = $region49
    $region48: #{tpu_custom_call.1} parent=1 // pred_region
      %s498 = ssub.s32 128, 128
      %499 = vsyncadd [#allocation4], %s498
      %s500 = sshll.u32 [#allocation7], 4
      %s501 = int_to_ptr.vmem [resolvable:$true] %s500
      %506 = dma.vmem_to_hbm [thread:$0]  %s501, 128, %s9, [#allocation4], 64, 64, 4
    $region49: #{tpu_custom_call.1} parent=1 // pred_fallthru
      _
    // Predicated region
    $region50: #{tpu_custom_call.1} parent=1 // pred_check
      _
    $region51: #{tpu_custom_call.1} parent=1 // pred_check_branch
      %508 = sbr.rel (0) target = $region53
    $region52: #{tpu_custom_call.1} parent=1 // pred_region
      %509 = dma.done [#allocation4], 128
    $region53: #{tpu_custom_call.1} parent=1 // pred_fallthru
      _
    %510 = vsyncpa [#allocation3], 1
    %511 = vsyncpa [#allocation6], 1
    %512 = vsyncpa [#allocation4], 1

</llo_original>
